<compile_context>
chip_gen: v7x
topology: tpu7x:2x2x1
jax: 0.10.0
libtpu: 0.0.40
codegen_flags: <defaults>
</compile_context>

<pallas_src>
import math

import jax
import jax.numpy as jnp
from jax.experimental import pallas as pl
from jax.experimental.pallas import tpu as pltpu


def _round_up(x, m):
    return (x + m - 1) // m * m


def _linear_kernel(x_ref, w_ref, b_ref, o_ref, acc_ref):
    """One (tm, tn) output tile; the K reduction runs over grid axis 2.

    x_ref:   (tm, tk)  activation tile (compute dtype)
    w_ref:   (tk, tn)  weight tile, already transposed to (K, N) layout
    b_ref:   (1,  tn)  bias tile (f32)
    o_ref:   (tm, tn)  output tile
    acc_ref: (tm, tn)  f32 accumulator, persists across the K grid axis

    NOTE: correctness of the single acc_ref scratch requires K to be the
    innermost (fastest-varying) grid axis and to stay "arbitrary".
    """
    k = pl.program_id(2)

    @pl.when(k == 0)
    def _():
        # Fold the bias into the accumulator init -> epilogue is cast+store only.
        acc_ref[...] = jnp.broadcast_to(
            b_ref[...].astype(jnp.float32), acc_ref.shape)

    # Plain (M,K) @ (K,N) contraction: RHS untransposed and lane-dense in N,
    # f32 accumulation on the MXU.
    acc_ref[...] += jnp.dot(x_ref[...], w_ref[...],
                            preferred_element_type=jnp.float32)

    @pl.when(k == pl.num_programs(2) - 1)
    def _():
        o_ref[...] = acc_ref[...].astype(o_ref.dtype)


def make_linear(weight, bias=None, *, compute_dtype=None,
                tm_target=512, tn_target=512, tk_target=2048,
                weight_buffer_count=2):
    """Build `apply(x) -> x @ weight.T + bias` backed by a Pallas TPU kernel.

    The weight transpose to (K, N), dtype cast, and any padding happen ONCE
    here (outside the per-call path).  `weight` is in PyTorch (out, in) layout;
    `bias` is (out,) or None.  `compute_dtype=jnp.bfloat16` enables bf16 MXU
    operands with f32 accumulation; the default keeps the original dtype.
    """
    assert tm_target % 8 == 0 and tn_target % 128 == 0 and tk_target % 128 == 0
    weight = jnp.asarray(weight)
    N, K = weight.shape
    cd = jnp.dtype(compute_dtype) if compute_dtype is not None else weight.dtype
    cd_bytes = jnp.dtype(cd).itemsize
    m_align = 16 if cd_bytes < 4 else 8   # bf16 sublane packing needs 16

    # Fixed-dim tiles (K -> reduction, N -> output lanes).  Use the full dim as
    # the block when it fits the target (no padding, single grid step along that
    # axis); otherwise a 128-aligned target tile with one-time padding here.
    if K <= tk_target:
        tk, Kp = K, K
    else:
        tk, Kp = tk_target, _round_up(K, tk_target)
    if N <= tn_target:
        tn, Np = N, N
    else:
        tn, Np = tn_target, _round_up(N, tn_target)

    # --- one-time weight / bias preparation (cached by the closure) ----------
    w_t = weight.T.astype(cd)                       # (K, N), lane-dense in N
    if (Kp, Np) != (K, N):
        w_t = jnp.pad(w_t, ((0, Kp - K), (0, Np - N)))
    b = bias if bias is not None else jnp.zeros((N,), weight.dtype)
    b2 = jnp.asarray(b).reshape(1, N).astype(jnp.float32)
    if Np != N:
        b2 = jnp.pad(b2, ((0, 0), (0, Np - N)))

    def apply(x):
        orig_dtype = x.dtype
        *lead, Kx = x.shape
        if Kx != K:
            raise ValueError(f"expected last dim {K}, got {Kx}")
        M = int(math.prod(lead)) if lead else 1

        if M <= tm_target:
            tm, Mp = M, M
        else:
            tm = _round_up(min(tm_target, M), m_align)
            Mp = _round_up(M, tm)

        # v7x has two TensorCores and dimension_semantics only shards grid axes
        # with >=2 blocks: if the whole (large) problem would be a single output
        # block, split tm so a "parallel" axis has at least 2 blocks.
        if (Mp // tm) * (Np // tn) == 1 and M >= 256:
            tm = _round_up((tm + 1) // 2, m_align)
            Mp = _round_up(M, tm)

        x2 = x.reshape(M, K).astype(cd)
        if (Mp, Kp) != (M, K):
            x2 = jnp.pad(x2, ((0, Mp - M), (0, Kp - K)))  # zero-pad K is exact

        # VMEM budget: double-buffered x / weight / output tiles + f32 acc.
        out_bytes = jnp.dtype(orig_dtype).itemsize
        vmem_bytes = (2 * tm * tk * cd_bytes
                      + max(weight_buffer_count, 2) * tk * tn * cd_bytes
                      + 2 * tm * tn * out_bytes
                      + tm * tn * 4
                      + 2 * tn * 4)
        # ~23 MiB at the default 512/512/2048 f32 tiles -> fits all generations
        # (v7x physical VMEM is 64 MiB) with headroom.
        vmem_limit = int(min(max(vmem_bytes + (4 << 20), 32 << 20), 100 << 20))

        w_spec_kwargs = {}
        if weight_buffer_count != 2:
            # Extra weight buffering helps when the K-sweep DMA is exposed
            # (mainly v5e with its lower HBM bandwidth).
            w_spec_kwargs["pipeline_mode"] = pl.Buffered(weight_buffer_count)

        out = pl.pallas_call(
            _linear_kernel,
            out_shape=jax.ShapeDtypeStruct((Mp, Np), orig_dtype),
            grid_spec=pltpu.PrefetchScalarGridSpec(
                num_scalar_prefetch=0,
                grid=(Mp // tm, Np // tn, Kp // tk),
                in_specs=[
                    pl.BlockSpec((tm, tk), lambda i, j, k: (i, k)),
                    pl.BlockSpec((tk, tn), lambda i, j, k: (k, j),
                                 **w_spec_kwargs),
                    pl.BlockSpec((1, tn), lambda i, j, k: (0, j)),
                ],
                out_specs=pl.BlockSpec((tm, tn), lambda i, j, k: (i, j)),
                scratch_shapes=[pltpu.VMEM((tm, tn), jnp.float32)],
            ),
            compiler_params=pltpu.CompilerParams(
                dimension_semantics=("parallel", "parallel", "arbitrary"),
                vmem_limit_bytes=vmem_limit,
            ),
        )(x2, w_t, b2)

        if (Mp, Np) != (M, N):
            out = out[:M, :N]
        return out.reshape(*lead, N)

    return apply


def linear(x, weight, bias=None, **kwargs):
    """One-off y = x @ weight.T + bias.  For repeated calls with the same
    weight prefer make_linear(...) so the weight transpose/pad happens once."""
    return make_linear(weight, bias, **kwargs)(x)


if __name__ == "__main__":
    # Shapes consistent with the module forward: x (batch, seq, in_features),
    # weight (out_features, in_features), bias (out_features,).
    batch, seq = 2, 8
    in_features, out_features = 32, 128   # out = 128 -> lane-dense output

    key = jax.random.PRNGKey(0)
    kx, kw, kb = jax.random.split(key, 3)
    x = jax.random.normal(kx, (batch, seq, in_features), dtype=jnp.float32)

    # Module init: xavier_uniform_ weight, zeros bias (bias=True default).
    limit = math.sqrt(6.0 / (in_features + out_features))
    weight = jax.random.uniform(kw, (out_features, in_features),
                                minval=-limit, maxval=limit, dtype=jnp.float32)
    bias = jnp.zeros((out_features,), dtype=jnp.float32)

    # 1) Exact-dtype path (matches nn.Linear numerics); weight prepared once.
    fwd = make_linear(weight, bias)
    out = jax.block_until_ready(fwd(x))
    ref = jnp.einsum("bsk,nk->bsn", x, weight) + bias
    assert out.shape == ref.shape, (out.shape, ref.shape)
    assert jnp.allclose(out, ref, atol=1e-4, rtol=1e-4), float(
        jnp.max(jnp.abs(out - ref)))

    # 2) Nonzero bias + multi-block M grid (forces tm=8 -> grid (2,1,1)).
    bias2 = jax.random.normal(kb, (out_features,), dtype=jnp.float32)
    ref2 = jnp.einsum("bsk,nk->bsn", x, weight) + bias2
    out2 = jax.block_until_ready(linear(x, weight, bias2, tm_target=8))
    assert jnp.allclose(out2, ref2, atol=1e-4, rtol=1e-4), float(
        jnp.max(jnp.abs(out2 - ref2)))

    # 3) Ragged M -> exercises the pad + slice-back path.
    x_ragged = x[:, :5, :]                      # M = 10, padded to 16
    out3 = jax.block_until_ready(linear(x_ragged, weight, bias2, tm_target=8))
    ref3 = jnp.einsum("bsk,nk->bsn", x_ragged, weight) + bias2
    assert jnp.allclose(out3, ref3, atol=1e-4, rtol=1e-4), float(
        jnp.max(jnp.abs(out3 - ref3)))

    # 4) bf16 MXU operands with f32 accumulation, vs a matching bf16 reference.
    fwd_bf16 = make_linear(weight, bias2, compute_dtype=jnp.bfloat16)
    out4 = jax.block_until_ready(fwd_bf16(x))
    ref4 = (jnp.einsum("bsk,nk->bsn",
                       x.astype(jnp.bfloat16), weight.astype(jnp.bfloat16),
                       preferred_element_type=jnp.float32)
            + bias2).astype(jnp.float32)
    assert jnp.allclose(out4, ref4, atol=5e-3, rtol=5e-3), float(
        jnp.max(jnp.abs(out4 - ref4)))

    print("KERNEL_OK")
</pallas_src>

<mosaic_0001>
module attributes {stable_mosaic.version = 11 : i64} {
  func.func @_linear_kernel(%arg0: i32, %arg1: i32, %arg2: i32, %arg3: memref<16x32xf32, #tpu.memory_space<vmem>>, %arg4: memref<32x128xf32, #tpu.memory_space<vmem>>, %arg5: memref<1x128xf32, #tpu.memory_space<vmem>>, %arg6: memref<16x128xf32, #tpu.memory_space<vmem>>, %arg7: memref<16x128xf32, #tpu.memory_space<vmem>>) attributes {dimension_semantics = [#tpu.dimension_semantics<parallel>, #tpu.dimension_semantics<parallel>, #tpu.dimension_semantics<arbitrary>], iteration_bounds = array<i64: 1, 1, 1>, scalar_prefetch = 0 : i64, scratch_operands = 1 : i64, tpu.core_type = #tpu.core_type<tc>, window_params = [{transform_indices = @transform_0, window_bounds = array<i64: 16, 32>}, {transform_indices = @transform_1, window_bounds = array<i64: 32, 128>}, {transform_indices = @transform_2, window_bounds = array<i64: 1, 128>}, {transform_indices = @transform_3, window_bounds = array<i64: 16, 128>}]} {
    %c0_i32 = arith.constant 0 : i32
    %0 = arith.cmpi eq, %arg2, %c0_i32 : i32
    %1 = arith.extui %0 : i1 to i32
    %c0_i32_0 = arith.constant 0 : i32
    %2 = arith.cmpi ne, %1, %c0_i32_0 : i32
    scf.if %2 {
      %c0_10 = arith.constant 0 : index
      %c0_11 = arith.constant 0 : index
      %12 = vector.load %arg5[%c0_10, %c0_11] : memref<1x128xf32, #tpu.memory_space<vmem>>, vector<1x128xf32>
      %13 = vector.shape_cast %12 : vector<1x128xf32> to vector<1x128xf32>
      %14 = vector.broadcast %13 : vector<1x128xf32> to vector<16x128xf32>
      %c0_12 = arith.constant 0 : index
      %c0_13 = arith.constant 0 : index
      %15 = vector.load %arg7[%c0_12, %c0_13] : memref<16x128xf32, #tpu.memory_space<vmem>>, vector<16x128xf32>
      tpu.vector_store %arg7[%c0_12, %c0_13], %14 {strides = array<i32>} : memref<16x128xf32, #tpu.memory_space<vmem>>, vector<16x128xf32>,
    } else {
    }
    %c0 = arith.constant 0 : index
    %c0_1 = arith.constant 0 : index
    %3 = vector.load %arg7[%c0, %c0_1] : memref<16x128xf32, #tpu.memory_space<vmem>>, vector<16x128xf32>
    %c0_2 = arith.constant 0 : index
    %c0_3 = arith.constant 0 : index
    %4 = vector.load %arg3[%c0_2, %c0_3] : memref<16x32xf32, #tpu.memory_space<vmem>>, vector<16x32xf32>
    %c0_4 = arith.constant 0 : index
    %c0_5 = arith.constant 0 : index
    %5 = vector.load %arg4[%c0_4, %c0_5] : memref<32x128xf32, #tpu.memory_space<vmem>>, vector<32x128xf32>
    %cst = arith.constant dense<0.000000e+00> : vector<16x128xf32>
    %6 = tpu.matmul %4, %5, %cst {dimension_numbers = #tpu.dot_dimension_numbers<[1], [0], [0], [1], [0, 0, 1, 1], [], []>} : vector<16x32xf32>, vector<32x128xf32>, vector<16x128xf32> -> vector<16x128xf32>
    %7 = arith.addf %3, %6 : vector<16x128xf32>
    %c0_6 = arith.constant 0 : index
    %c0_7 = arith.constant 0 : index
    %8 = vector.load %arg7[%c0_6, %c0_7] : memref<16x128xf32, #tpu.memory_space<vmem>>, vector<16x128xf32>
    tpu.vector_store %arg7[%c0_6, %c0_7], %7 {strides = array<i32>} : memref<16x128xf32, #tpu.memory_space<vmem>>, vector<16x128xf32>,
    %c0_i32_8 = arith.constant 0 : i32
    %9 = arith.cmpi eq, %arg2, %c0_i32_8 : i32
    %10 = arith.extui %9 : i1 to i32
    %c0_i32_9 = arith.constant 0 : i32
    %11 = arith.cmpi ne, %10, %c0_i32_9 : i32
    scf.if %11 {
      %c0_10 = arith.constant 0 : index
      %c0_11 = arith.constant 0 : index
      %12 = vector.load %arg7[%c0_10, %c0_11] : memref<16x128xf32, #tpu.memory_space<vmem>>, vector<16x128xf32>
      %c0_12 = arith.constant 0 : index
      %c0_13 = arith.constant 0 : index
      %13 = vector.load %arg6[%c0_12, %c0_13] : memref<16x128xf32, #tpu.memory_space<vmem>>, vector<16x128xf32>
      tpu.vector_store %arg6[%c0_12, %c0_13], %12 {strides = array<i32>} : memref<16x128xf32, #tpu.memory_space<vmem>>, vector<16x128xf32>,
    } else {
    }
    return
  }
  func.func @transform_0(%arg0: i32, %arg1: i32, %arg2: i32) -> (i32, i32) {
    %c0_i32 = arith.constant 0 : i32
    return %arg0, %arg2 : i32, i32
  }
  func.func @transform_1(%arg0: i32, %arg1: i32, %arg2: i32) -> (i32, i32) {
    %c0_i32 = arith.constant 0 : i32
    return %arg2, %arg1 : i32, i32
  }
  func.func @transform_2(%arg0: i32, %arg1: i32, %arg2: i32) -> (i32, i32) {
    %c0_i32 = arith.constant 0 : i32
    %c0_i32_0 = arith.constant 0 : i32
    return %c0_i32, %arg1 : i32, i32
  }
  func.func @transform_3(%arg0: i32, %arg1: i32, %arg2: i32) -> (i32, i32) {
    %c0_i32 = arith.constant 0 : i32
    return %arg0, %arg1 : i32, i32
  }
}

</mosaic_0001>

<llo_original>
// kernel: tpu_custom_call.1
$region0: #{tpu_custom_call.1}
  #allocation0 [shape = 'u32[]', space=smem, size = 0x4, offset = 0x4, fixed_abs, tag = 'smem constant byte address 0x4 - core index']
  #allocation1 [shape = 'u32[144,128]{1,0:T(1,128)}', space=vmem, size = 0x12000, scoped, tag = 'internal scratch']
  #allocation2 [shape = 'f32[16,128]{1,0:T(8,128)}', space=vmem, size = 0x2000, scoped, tag = 'scratch operand']
  %s0 = inlined_call_operand.hbm [shape: f32[16,32], index: 0, kind: input, shape index: {}]
  %s1 = inlined_call_operand.hbm [shape: f32[32,128], index: 1, kind: input, shape index: {}]
  %s2 = inlined_call_operand.vmem [shape: f32[1,128], index: 2, kind: input, shape index: {}]
  %s3 = inlined_call_operand.hbm [shape: f32[16,128], index: 3, kind: output, shape index: {}]
  %s4 = sld [smem:[#allocation0]]
  $region38: #{tpu_custom_call.1} parent=0
    _
  %s6 = ssub.s32 1, %s4
  %s7 = scalar_select 0, %s6, %s4
  $region1: #{tpu_custom_call.1} parent=0
    #allocation3 [shape = 'u8[8192]{0}', space=vmem, size = 0x2000, scoped, tag = 'input window, operand 0, single buffered']
    #allocation4 [shape = 's32[1]{0}', space=sflag, size = 0x4, scoped, tag = 'scoped memory for tpu_custom_call.1']
    #allocation5 [shape = 's32[1]{0}', space=sflag, size = 0x4, scoped, tag = 'scoped memory for tpu_custom_call.1']
    #allocation6 [shape = 'u8[16384]{0}', space=vmem, size = 0x4000, scoped, tag = 'input window, operand 1, single buffered']
    #allocation7 [shape = 's32[1]{0}', space=sflag, size = 0x4, scoped, tag = 'scoped memory for tpu_custom_call.1']
    #allocation8 [shape = 'u8[8192]{0}', space=vmem, size = 0x2000, scoped, tag = 'output window, operand 0, single buffered']
    %8 = vsyncpa [#allocation4], 0
    %9 = vsyncpa [#allocation7], 0
    %10 = vsyncpa [#allocation5], 0
    // Predicated region
    $region2: #{tpu_custom_call.1} parent=1 // pred_check
      _
    $region3: #{tpu_custom_call.1} parent=1 // pred_check_branch
      %12 = sbr.rel (0) target = $region5
    $region4: #{tpu_custom_call.1} parent=1 // pred_region
      %s14 = ssub.s32 256, 256
      %15 = vsyncadd [#allocation4], %s14
      %s16 = sshll.u32 [#allocation3], 4
      %s17 = int_to_ptr.vmem [resolvable:$true] %s16
      %22 = dma.hbm_to_vmem [thread:$0]  %s0, 256, %s17, [#allocation4], 128, 128, 8
    $region5: #{tpu_custom_call.1} parent=1 // pred_fallthru
      _
    // Predicated region
    $region6: #{tpu_custom_call.1} parent=1 // pred_check
      _
    $region7: #{tpu_custom_call.1} parent=1 // pred_check_branch
      %24 = sbr.rel (0) target = $region9
    $region8: #{tpu_custom_call.1} parent=1 // pred_region
      %s26 = ssub.s32 512, 512
      %27 = vsyncadd [#allocation7], %s26
      %s28 = sshll.u32 [#allocation6], 4
      %s29 = int_to_ptr.vmem [resolvable:$true] %s28
      %34 = dma.hbm_to_vmem [thread:$0]  %s1, 512, %s29, [#allocation7], 128, 128, 8
    $region9: #{tpu_custom_call.1} parent=1 // pred_fallthru
      _
    // Predicated region
    $region10: #{tpu_custom_call.1} parent=1 // pred_check
      _
    $region11: #{tpu_custom_call.1} parent=1 // pred_check_branch
      %36 = sbr.rel (0) target = $region13
    $region12: #{tpu_custom_call.1} parent=1 // pred_region
      _
    $region13: #{tpu_custom_call.1} parent=1 // pred_fallthru
      _
    // Predicated region
    $region14: #{tpu_custom_call.1} parent=1 // pred_check
      _
    $region15: #{tpu_custom_call.1} parent=1 // pred_check_branch
      %38 = sbr.rel (0) target = $region17
    $region16: #{tpu_custom_call.1} parent=1 // pred_region
      %39 = dma.done [#allocation4], 256
    $region17: #{tpu_custom_call.1} parent=1 // pred_fallthru
      _
    // Predicated region
    $region18: #{tpu_custom_call.1} parent=1 // pred_check
      _
    $region19: #{tpu_custom_call.1} parent=1 // pred_check_branch
      %41 = sbr.rel (0) target = $region21
    $region20: #{tpu_custom_call.1} parent=1 // pred_region
      %42 = dma.done [#allocation7], 512
    $region21: #{tpu_custom_call.1} parent=1 // pred_fallthru
      _
    %p43 = scmp.eq.s32.totalorder 0, 0
    // Predicated region
    $region22: #{tpu_custom_call.1} parent=1 // pred_check
      %p44 = pneg %p43
    $region23: #{tpu_custom_call.1} parent=1 // pred_check_branch
      %46 = sbr.rel (%p44) target = $region25
    $region24: #{tpu_custom_call.1} parent=1 // pred_region
      %v47 = vld [vmem:[%s2] sm:$0x1]
      %v49 = vlaneseq
      %v50 = vshrl.u32 %v49, 7
      %v51 = vsub.s32 0, %v50
      %v52 = vrot.slane %v47, %v51
      %54 = vst [vmem:[#allocation2] sm:$0xff] %v52
      %55 = vst [vmem:[#allocation2 + $0x8] sm:$0xff] %v52
    $region25: #{tpu_custom_call.1} parent=1 // pred_fallthru
      _
    %v56 = vld [vmem:[#allocation2] sm:$0xff]
    %v57 = vld [vmem:[#allocation2 + $0x8] sm:$0xff]
    %v58 = vld [vmem:[#allocation3] sm:$0xff]
    %v59 = vld [vmem:[#allocation3 + $0x8] sm:$0xff]
    %v60 = vld [vmem:[#allocation6] sm:$0xff]
    %v61 = vld [vmem:[#allocation6 + $0x8] sm:$0xff]
    %v62 = vld [vmem:[#allocation6 + $0x10] sm:$0xff]
    %v63 = vld [vmem:[#allocation6 + $0x18] sm:$0xff]
    %vm64 = vcmask 261120
    %v66 = vsel %vm64, %v58, 0
    %v69 = vsel %vm64, %v59, 0
    %71 = vmatprep.subr.mxu0 0.0
    %72 = vmatpush1.msra.mxu0 %v60
    %73 = vmatprep.subr.mxu0 0.0
    %74 = vmatpush1.msra.mxu0 %v61
    %75 = vmatprep.subr.mxu0 0.0
    %76 = vmatpush1.msra.mxu0 %v62
    %77 = vmatprep.subr.mxu0 0.0
    %78 = vmatpush1.msra.mxu0 %v63
    %79 = vmatprep.subr.mxu0 0.0
    %80 = vmatpush1.msra.mxu0 0.0
    %81 = vmatprep.subr.mxu0 0.0
    %82 = vmatpush1.msra.mxu0 0.0
    %83 = vmatprep.subr.mxu0 0.0
    %84 = vmatpush1.msra.mxu0 0.0
    %85 = vmatprep.subr.mxu0 0.0
    %86 = vmatpush1.msra.mxu0 0.0
    %87 = vmatprep.subr.mxu0 0.0
    %88 = vmatpush1.msra.mxu0 0.0
    %89 = vmatprep.subr.mxu0 0.0
    %90 = vmatpush1.msra.mxu0 0.0
    %91 = vmatprep.subr.mxu0 0.0
    %92 = vmatpush1.msra.mxu0 0.0
    %93 = vmatprep.subr.mxu0 0.0
    %94 = vmatpush1.msra.mxu0 0.0
    %95 = vmatprep.subr.mxu0 0.0
    %96 = vmatpush1.msra.mxu0 0.0
    %97 = vmatprep.subr.mxu0 0.0
    %98 = vmatpush1.msra.mxu0 0.0
    %99 = vmatprep.subr.mxu0 0.0
    %100 = vmatpush1.msra.mxu0 0.0
    %101 = vmatprep.subr.mxu0 0.0
    %102 = vmatpush1.msra.mxu0 0.0
    %103 = vmatprep.subr.mxu0 0.0
    %104 = vmatpush1.msra.mxu0 0.0
    %105 = vmatprep.subr.mxu0 0.0
    %106 = vmatpush1.msra.mxu0 0.0
    %107 = vmatprep.subr.mxu0 0.0
    %108 = vmatpush1.msra.mxu0 0.0
    %109 = vmatprep.subr.mxu0 0.0
    %110 = vmatpush1.msra.mxu0 0.0
    %111 = vmatprep.subr.mxu0 0.0
    %112 = vmatpush1.msra.mxu0 0.0
    %113 = vmatprep.subr.mxu0 0.0
    %114 = vmatpush1.msra.mxu0 0.0
    %115 = vmatprep.subr.mxu0 0.0
    %116 = vmatpush1.msra.mxu0 0.0
    %117 = vmatprep.subr.mxu0 0.0
    %118 = vmatpush1.msra.mxu0 0.0
    %119 = vmatprep.subr.mxu0 0.0
    %120 = vmatpush1.msra.mxu0 0.0
    %121 = vmatprep.subr.mxu0 0.0
    %122 = vmatpush1.msra.mxu0 0.0
    %123 = vmatprep.subr.mxu0 0.0
    %124 = vmatpush1.msra.mxu0 0.0
    %125 = vmatprep.subr.mxu0 0.0
    %126 = vmatpush1.msra.mxu0 0.0
    %127 = vmatprep.subr.mxu0 0.0
    %128 = vmatpush1.msra.mxu0 0.0
    %129 = vmatprep.subr.mxu0 0.0
    %130 = vmatpush1.msra.mxu0 0.0
    %131 = vmatprep.subr.mxu0 0.0
    %132 = vmatpush1.msra.mxu0 0.0
    %133 = vmatprep.subr.mxu0 0.0
    %134 = vmatpush1.msra.mxu0 0.0
    %135 = vmatprep.mubr.f32.mxu0 0.0
    %136 = vmatmul.mubr.f32.gmra.mrb[0].mxu0 %v66
    %v137 = vpop.f32.mrb[0].mxu0
    %v138 = vadd.f32 0.0, %v137
    %v139 = vpop.f32.mrb[0].mxu0
    %140 = vmatprep.mubr.f32.mxu0 0.0
    %141 = vmatmul.mubr.f32.gmra.mrb[0].mxu0 %v69
    %v142 = vpop.f32.mrb[0].mxu0
    %v143 = vadd.f32 0.0, %v142
    %v144 = vpop.f32.mrb[0].mxu0
    %145 = vdwg.mxu0
    %v146 = vadd.f32 %v56, %v138
    %v147 = vadd.f32 %v57, %v143
    %148 = vst [vmem:[#allocation2] sm:$0xff] %v146
    %149 = vst [vmem:[#allocation2 + $0x8] sm:$0xff] %v147
    // Predicated region
    $region26: #{tpu_custom_call.1} parent=1 // pred_check
      %p150 = pneg %p43
    $region27: #{tpu_custom_call.1} parent=1 // pred_check_branch
      %152 = sbr.rel (%p150) target = $region29
    $region28: #{tpu_custom_call.1} parent=1 // pred_region
      %v153 = vld [vmem:[#allocation2] sm:$0xff]
      %v154 = vld [vmem:[#allocation2 + $0x8] sm:$0xff]
      %155 = vst [vmem:[#allocation8] sm:$0xff] %v153
      %156 = vst [vmem:[#allocation8 + $0x8] sm:$0xff] %v154
    $region29: #{tpu_custom_call.1} parent=1 // pred_fallthru
      _
    // Predicated region
    $region30: #{tpu_custom_call.1} parent=1 // pred_check
      _
    $region31: #{tpu_custom_call.1} parent=1 // pred_check_branch
      %158 = sbr.rel (0) target = $region33
    $region32: #{tpu_custom_call.1} parent=1 // pred_region
      %s160 = ssub.s32 256, 256
      %161 = vsyncadd [#allocation5], %s160
      %s162 = sshll.u32 [#allocation8], 4
      %s163 = int_to_ptr.vmem [resolvable:$true] %s162
      %168 = dma.vmem_to_hbm [thread:$0]  %s163, 256, %s3, [#allocation5], 128, 128, 8
    $region33: #{tpu_custom_call.1} parent=1 // pred_fallthru
      _
    // Predicated region
    $region34: #{tpu_custom_call.1} parent=1 // pred_check
      _
    $region35: #{tpu_custom_call.1} parent=1 // pred_check_branch
      %170 = sbr.rel (0) target = $region37
    $region36: #{tpu_custom_call.1} parent=1 // pred_region
      %171 = dma.done [#allocation5], 256
    $region37: #{tpu_custom_call.1} parent=1 // pred_fallthru
      _
    %172 = vsyncpa [#allocation4], 1
    %173 = vsyncpa [#allocation7], 1
    %174 = vsyncpa [#allocation5], 1

</llo_original>
